<compile_context>
chip_gen: v5e
topology: v5e:2x2
jax: 0.10.0
libtpu: 0.0.40
codegen_flags: <defaults>
</compile_context>

<pallas_src>
import jax
import jax.numpy as jnp
from jax.experimental import pallas as pl
from jax.experimental.pallas import tpu as pltpu


def _copy_kernel(x_ref, o_ref):
    # Identity tile copy (explicit materialization of the flattened view).
    o_ref[...] = x_ref[...]


_LANE = 128
_MAX_LANE_WIDTH = 32768                  # lane-dense slab width cap (biggest store-side lever)
_TARGET_BLOCK_BYTES = 6 * 1024 * 1024    # ~6 MiB/block -> ~24 MiB resident w/ double buffering
_MIN_GRID = 8                            # keep enough programs for megacore row-sharding
_VMEM_LIMIT_BYTES = 48 << 20             # raise scoped VMEM; < 64 MiB physical on v7x


def _pick_lane_width(total: int) -> int:
    """Largest multiple of 128 that divides `total`, capped at _MAX_LANE_WIDTH."""
    k = min(_MAX_LANE_WIDTH, total) // _LANE
    while k >= 1:
        cand = k * _LANE
        if total % cand == 0:
            return cand
        k -= 1
    return 0


def _pick_row_tile(rows_slab: int, lane_w: int, itemsize: int) -> int:
    """Fixed byte-targeted row tile (multiple of packed sublane count).

    No exact-divisor requirement: the grid uses cdiv and Pallas handles the
    ragged last block.  The tile is capped so the grid has >= _MIN_GRID
    programs when the slab is large enough (megacore sharding on v7x).
    """
    sub = max(8, 32 // max(1, itemsize))  # 8 for f32, 16 for bf16, 32 for int8
    if rows_slab <= sub:
        return rows_slab                  # full extent along rows (legal block shape)
    target = max(sub, _TARGET_BLOCK_BYTES // (lane_w * itemsize))
    grid_cap = max(sub, -(-rows_slab // _MIN_GRID))   # cdiv(rows_slab, _MIN_GRID)
    tile = min(target, grid_cap, rows_slab)
    tile = max(sub, (tile // sub) * sub)
    return tile


def flatten_pallas(x: jax.Array, num_neurons_flatten: int,
                   materialize: bool = False) -> jax.Array:
    """Equivalent of Flatten(num_neurons_flatten)(x) for a contiguous NCHW tensor.

    materialize=False (default): metadata-only reshape, zero HBM traffic.
    materialize=True: explicit HBM-roofline identity copy via Pallas.
    """
    total = x.size
    assert total % num_neurons_flatten == 0, (
        f"total elements {total} not divisible by {num_neurons_flatten}"
    )
    rows = total // num_neurons_flatten
    out_shape = (rows, num_neurons_flatten)

    if not materialize:
        # Flatten is metadata-only; do not spend 2x tensor bytes of HBM traffic.
        return jnp.reshape(x, out_shape)

    lane_w = _pick_lane_width(total)
    if lane_w == 0:
        # TODO(synk): tiny / non-128-multiple tensors skip the Pallas copy.
        return jnp.reshape(x, out_shape)

    rows_slab = total // lane_w
    itemsize = jnp.dtype(x.dtype).itemsize
    row_tile = _pick_row_tile(rows_slab, lane_w, itemsize)
    grid = (pl.cdiv(rows_slab, row_tile),)

    # Metadata-only reshape to a lane-dense slab (identity copy is
    # partition-agnostic, so copying the slab == copying the (rows, n) view).
    x_slab = jnp.reshape(x, (rows_slab, lane_w))

    out_slab = pl.pallas_call(
        _copy_kernel,
        out_shape=jax.ShapeDtypeStruct((rows_slab, lane_w), x.dtype),
        grid_spec=pltpu.PrefetchScalarGridSpec(
            num_scalar_prefetch=0,
            grid=grid,
            in_specs=[pl.BlockSpec((row_tile, lane_w), lambda i: (i, 0))],
            out_specs=pl.BlockSpec((row_tile, lane_w), lambda i: (i, 0)),
        ),
        compiler_params=pltpu.CompilerParams(
            dimension_semantics=("parallel",),        # megacore can split the row grid
            vmem_limit_bytes=_VMEM_LIMIT_BYTES,       # allow >2 MiB tiles on all gens
        ),
        cost_estimate=pl.CostEstimate(
            flops=0,
            transcendentals=0,
            bytes_accessed=2 * total * itemsize,      # pure-bandwidth kernel
        ),
    )(x_slab)

    # Free metadata reshape back to the flattened (batch, N) layout.
    return jnp.reshape(out_slab, out_shape)


if __name__ == "__main__":
    # Small shapes consistent with the module: NCHW input.
    B, C, H, W = 2, 4, 16, 16
    num_neurons_flatten = C * H * W  # 1024

    key = jax.random.PRNGKey(0)
    x = jax.random.normal(key, (B, C, H, W), dtype=jnp.float32)

    # Exercise the Pallas kernel path (explicit materialization).
    y = flatten_pallas(x, num_neurons_flatten, materialize=True)
    y = jax.block_until_ready(y)

    # Default (recommended) metadata-only path.
    y_fast = flatten_pallas(x, num_neurons_flatten)
    y_fast = jax.block_until_ready(y_fast)

    # Reference check against plain row-major reshape (torch .view semantics).
    y_ref = jnp.reshape(x, (-1, num_neurons_flatten))
    assert y.shape == (B, num_neurons_flatten)
    assert y.dtype == x.dtype
    assert bool(jnp.array_equal(y, y_ref))
    assert bool(jnp.array_equal(y_fast, y_ref))

    print("KERNEL_OK")
</pallas_src>

<mosaic_0001>
module attributes {stable_mosaic.version = 11 : i64} {
  func.func @_copy_kernel(%arg0: i32, %arg1: memref<1x2048xf32, #tpu.memory_space<vmem>>, %arg2: memref<1x2048xf32, #tpu.memory_space<vmem>>) attributes {dimension_semantics = [#tpu.dimension_semantics<parallel>], iteration_bounds = array<i64: 1>, scalar_prefetch = 0 : i64, scratch_operands = 0 : i64, tpu.core_type = #tpu.core_type<tc>, window_params = [{transform_indices = @transform_0, window_bounds = array<i64: 1, 2048>}, {transform_indices = @transform_1, window_bounds = array<i64: 1, 2048>}]} {
    %c0 = arith.constant 0 : index
    %c0_0 = arith.constant 0 : index
    %0 = vector.load %arg1[%c0, %c0_0] : memref<1x2048xf32, #tpu.memory_space<vmem>>, vector<1x2048xf32>
    %c0_1 = arith.constant 0 : index
    %c0_2 = arith.constant 0 : index
    %1 = vector.load %arg2[%c0_1, %c0_2] : memref<1x2048xf32, #tpu.memory_space<vmem>>, vector<1x2048xf32>
    tpu.vector_store %arg2[%c0_1, %c0_2], %0 {strides = array<i32>} : memref<1x2048xf32, #tpu.memory_space<vmem>>, vector<1x2048xf32>,
    return
  }
  func.func @transform_0(%arg0: i32) -> (i32, i32) {
    %c0_i32 = arith.constant 0 : i32
    %c0_i32_0 = arith.constant 0 : i32
    return %arg0, %c0_i32 : i32, i32
  }
  func.func @transform_1(%arg0: i32) -> (i32, i32) {
    %c0_i32 = arith.constant 0 : i32
    %c0_i32_0 = arith.constant 0 : i32
    return %arg0, %c0_i32 : i32, i32
  }
}

</mosaic_0001>

<llo_original>
// kernel: tpu_custom_call.1
$region0: #{tpu_custom_call.1}
  #allocation0 [shape = 'u32[]', space=smem, size = 0x4, offset = 0x4, fixed_abs, tag = 'smem constant byte address 0x4 - core index']
  #allocation1 [shape = 'u32[72,128]{1,0:T(1,128)}', space=vmem, size = 0x9000, scoped, tag = 'internal scratch']
  %s0 = inlined_call_operand.hbm [shape: f32[1,2048], index: 0, kind: input, shape index: {}]
  %s1 = inlined_call_operand.hbm [shape: f32[1,2048], index: 1, kind: output, shape index: {}]
  %s2 = sld [smem:[#allocation0]]
  $region18: #{tpu_custom_call.1} parent=0
    _
  %s4 = ssub.s32 1, %s2
  %s5 = scalar_select 0, %s4, %s2
  $region1: #{tpu_custom_call.1} parent=0
    #allocation2 [shape = 'u8[8192]{0}', space=vmem, size = 0x2000, scoped, tag = 'input window, operand 0, single buffered']
    #allocation3 [shape = 's32[1]{0}', space=sflag, size = 0x4, scoped, tag = 'scoped memory for tpu_custom_call.1']
    #allocation4 [shape = 's32[1]{0}', space=sflag, size = 0x4, scoped, tag = 'scoped memory for tpu_custom_call.1']
    #allocation5 [shape = 'u8[8192]{0}', space=vmem, size = 0x2000, scoped, tag = 'output window, operand 0, single buffered']
    %6 = vsyncpa [#allocation3], 0
    %7 = vsyncpa [#allocation4], 0
    // Predicated region
    $region2: #{tpu_custom_call.1} parent=1 // pred_check
      _
    $region3: #{tpu_custom_call.1} parent=1 // pred_check_branch
      %9 = sbr.rel (0) target = $region5
    $region4: #{tpu_custom_call.1} parent=1 // pred_region
      %11 = vsyncadd [#allocation3], 0
      %s13 = sshll.u32 %s0, 4
      %s14 = int_to_ptr.hbm [resolvable:$true] %s13
      %s15 = sshll.u32 [#allocation2], 4
      %s16 = int_to_ptr.vmem [resolvable:$true] %s15
      %18 = dma.hbm_to_vmem [thread:$0]  %s14, 256, %s16, [#allocation3]
    $region5: #{tpu_custom_call.1} parent=1 // pred_fallthru
      _
    // Predicated region
    $region6: #{tpu_custom_call.1} parent=1 // pred_check
      _
    $region7: #{tpu_custom_call.1} parent=1 // pred_check_branch
      %20 = sbr.rel (0) target = $region9
    $region8: #{tpu_custom_call.1} parent=1 // pred_region
      %22 = dma.done [#allocation3], 256
    $region9: #{tpu_custom_call.1} parent=1 // pred_fallthru
      _
    %v23 = vld [vmem:[#allocation2] sm:$0xff]
    %v24 = vld [vmem:[#allocation2 + $0x8] sm:$0xff]
    %25 = vst [vmem:[#allocation5] sm:$0xff] %v23
    %26 = vst [vmem:[#allocation5 + $0x8] sm:$0xff] %v24
    // Predicated region
    $region10: #{tpu_custom_call.1} parent=1 // pred_check
      _
    $region11: #{tpu_custom_call.1} parent=1 // pred_check_branch
      %28 = sbr.rel (0) target = $region13
    $region12: #{tpu_custom_call.1} parent=1 // pred_region
      %30 = vsyncadd [#allocation4], 0
      %s32 = sshll.u32 [#allocation5], 4
      %s33 = int_to_ptr.vmem [resolvable:$true] %s32
      %s34 = sshll.u32 %s1, 4
      %s35 = int_to_ptr.hbm [resolvable:$true] %s34
      %37 = dma.vmem_to_hbm [thread:$0]  %s33, 256, %s35, [#allocation4]
    $region13: #{tpu_custom_call.1} parent=1 // pred_fallthru
      _
    // Predicated region
    $region14: #{tpu_custom_call.1} parent=1 // pred_check
      _
    $region15: #{tpu_custom_call.1} parent=1 // pred_check_branch
      %39 = sbr.rel (0) target = $region17
    $region16: #{tpu_custom_call.1} parent=1 // pred_region
      %41 = dma.done [#allocation4], 256
    $region17: #{tpu_custom_call.1} parent=1 // pred_fallthru
      _
    %42 = vsyncpa [#allocation3], 1
    %43 = vsyncpa [#allocation4], 1

</llo_original>
